<compile_context>
chip_gen: v5e
topology: v5e:2x2
jax: 0.10.0
libtpu: 0.0.40
codegen_flags: <defaults>
</compile_context>

<pallas_src>
import functools
import math

import jax
import jax.numpy as jnp
from jax import lax
from jax.experimental import pallas as pl
from jax.experimental.pallas import tpu as pltpu


# ----------------------------------------------------------------------------------------------
# Parameter-setup glue (the `pe` buffer built in PositionalEncodingSin.__init__) — plain JAX.
# ----------------------------------------------------------------------------------------------
def make_sinusoidal_pe(d_model: int, max_len: int = 5000, dtype=jnp.float32):
    """Replicates PositionalEncodingSin's `pe` buffer as a 2-D [max_len, d_model] table.

    Pass dtype=jnp.bfloat16 when the activations are bf16 so the pe stream is half the HBM bytes
    (the kernel upcasts to f32 for the add).
    """
    assert d_model % 2 == 0, "sinusoidal positional encoding requires an even d_model"
    position = jnp.arange(max_len, dtype=jnp.float32)[:, None]                       # [max_len, 1]
    div_term = jnp.exp(
        jnp.arange(0, d_model, 2, dtype=jnp.float32) * (-math.log(10000.0) / d_model)
    )                                                                                # [d_model//2]
    pe = jnp.zeros((max_len, d_model), jnp.float32)
    pe = pe.at[:, 0::2].set(jnp.sin(position * div_term))
    pe = pe.at[:, 1::2].set(jnp.cos(position * div_term))
    return pe.astype(dtype)


# ----------------------------------------------------------------------------------------------
# Integer hash used for fused dropout (pure int32 ops — lowers on Mosaic and interpret mode).
# ----------------------------------------------------------------------------------------------
def _as_i32(v: int) -> int:
    v &= 0xFFFFFFFF
    return v - (1 << 32) if v >= (1 << 31) else v


_GOLDEN = _as_i32(0x9E3779B1)
_MIX1 = _as_i32(0x7FEB352D)
_MIX2 = _as_i32(0x846CA68B)


def _hash32(x):
    """lowbias32-style avalanche; int32 arithmetic wraps (two's complement), which is intended."""
    x = x ^ lax.shift_right_logical(x, jnp.int32(16))
    x = x * jnp.int32(_MIX1)
    x = x ^ lax.shift_right_logical(x, jnp.int32(15))
    x = x * jnp.int32(_MIX2)
    x = x ^ lax.shift_right_logical(x, jnp.int32(16))
    return x


# ----------------------------------------------------------------------------------------------
# Kernel
# ----------------------------------------------------------------------------------------------
def _make_kernel(scale: float, vocab: int, tile_l: int, embed_dim: int, l_pad: int,
                 train: bool, dropout_p: float):
    keep_p = 1.0 - dropout_p
    inv_keep = (1.0 / keep_p) if keep_p > 0.0 else 0.0
    keep_thresh = int(round(keep_p * (1 << 24)))           # keep <=> 24-bit uniform < threshold

    def kernel(tgt_ref, table_ref, pe_ref, seed_ref, o_ref):
        # tgt_ref  : (tile_l, 1)   int32  token ids for (batch b, seq block i)
        # table_ref: (vocab, E)           full VMEM-resident embedding table
        # pe_ref   : (tile_l, E)          positional rows for seq block i (reused across batch)
        # seed_ref : (1,) int32 in SMEM   (only used on the training path)
        # o_ref    : (tile_l, E)          output block
        ids = tgt_ref[...]                                                   # (tile_l, 1) int32
        vocab_ids = lax.broadcasted_iota(jnp.int32, (tile_l, vocab), 1)      # (tile_l, vocab)
        onehot = (ids == vocab_ids).astype(jnp.float32)                      # exact row selector
        emb = jnp.dot(onehot, table_ref[...].astype(jnp.float32),
                      preferred_element_type=jnp.float32)                    # (tile_l, E)
        y = emb * scale + pe_ref[...].astype(jnp.float32)

        if train and dropout_p > 0.0:
            i = pl.program_id(0)                                             # sequence block
            b = pl.program_id(1)                                             # batch element
            row = lax.broadcasted_iota(jnp.int32, (tile_l, embed_dim), 0) + i * tile_l
            col = lax.broadcasted_iota(jnp.int32, (tile_l, embed_dim), 1)
            lin = b * jnp.int32(l_pad * embed_dim) + row * jnp.int32(embed_dim) + col
            x = lin ^ (seed_ref[0] * jnp.int32(_GOLDEN))
            bits = _hash32(_hash32(x) + jnp.int32(_GOLDEN))
            r24 = lax.shift_right_logical(bits, jnp.int32(8))                # uniform in [0, 2^24)
            keep = r24 < jnp.int32(keep_thresh)
            y = jnp.where(keep, y * inv_keep, jnp.zeros_like(y))

        o_ref[...] = y.astype(o_ref.dtype)

    return kernel


# ----------------------------------------------------------------------------------------------
# Tiling helpers
# ----------------------------------------------------------------------------------------------
def _round_up(x: int, m: int) -> int:
    return -(-x // m) * m


def _pick_tile_l(L: int, row_bytes: int, target_bytes: int, sublane: int) -> int:
    """Pick a sublane-aligned sequence tile whose block stays under target_bytes."""
    l_aligned = _round_up(L, sublane)
    if l_aligned * row_bytes <= target_bytes:
        return l_aligned                                   # whole (padded) sequence in one block
    max_rows = max(sublane, (target_bytes // max(row_bytes, 1)) // sublane * sublane)
    best_div = None
    for t in range(sublane, max_rows + 1, sublane):        # prefer an exact divisor (no padding)
        if L % t == 0:
            best_div = t
    return best_div if best_div is not None else max_rows  # non-divisor -> wrapper pads L


# ----------------------------------------------------------------------------------------------
# Wrapper: fused embedding gather + *sqrt(E) + positional encoding + dropout -> [B, L, E].
# ----------------------------------------------------------------------------------------------
def decoder_embed_forward(
    targets,                # [B, L] int32 token ids
    emb_table,              # [action_size, E] embedding weights
    pe,                     # [max_len, E] sinusoidal table (full; BlockSpec selects rows)
    seed,                   # (1,) int32 PRNG seed (ignored when train=False)
    *,
    dropout_p: float,
    train: bool,
    tile_l=None,
    target_block_bytes: int = 2 << 20,   # 2 MiB blocks: <10% per-step overhead on v7x HBM, safe VMEM
):
    B, L = targets.shape
    V, E = emb_table.shape
    max_len, e_pe = pe.shape
    assert e_pe == E, f"pe feature dim {e_pe} != embedding dim {E}"
    assert 0.0 <= dropout_p < 1.0

    out_dtype = emb_table.dtype
    itemsize = jnp.dtype(out_dtype).itemsize
    pe_itemsize = jnp.dtype(pe.dtype).itemsize
    sublane = max(8, 32 // itemsize)                       # 8 rows f32, 16 bf16, 32 int8/fp8
    row_bytes = E * (itemsize + pe_itemsize)               # one row of pe in + one row of out

    if tile_l is None:
        tile_l = _pick_tile_l(L, row_bytes, target_block_bytes, sublane)
    assert tile_l % sublane == 0, f"tile_l must be a multiple of {sublane} for dtype {out_dtype}"

    n_blocks = -(-L // tile_l)
    L_pad = n_blocks * tile_l                              # ragged L -> pad (no full-L fallback)
    assert L_pad <= max_len, f"padded sequence length {L_pad} exceeds positional max_len {max_len}"

    tgt = jnp.asarray(targets, jnp.int32)
    if L_pad != L:
        tgt = jnp.pad(tgt, ((0, 0), (0, L_pad - L)))       # pad with token 0; sliced off below
    tgt = tgt.reshape(B, L_pad, 1)                         # ids as a sublane-oriented column

    seed = jnp.asarray(seed, jnp.int32).reshape((1,))

    # Explicit VMEM budget: double-buffered (ids + pe + out) blocks plus the resident table,
    # with 2x headroom, clamped to [16 MiB, 48 MiB] (safe on v5e/v6e 128 MiB and v7x 64 MiB).
    tgt_blk = tile_l * 4
    pe_blk = tile_l * E * pe_itemsize
    out_blk = tile_l * E * itemsize
    table_bytes = V * E * itemsize
    working_set = 2 * (tgt_blk + pe_blk + out_blk + table_bytes)
    vmem_limit_bytes = int(min(48 << 20, max(16 << 20, 2 * working_set)))

    kernel = _make_kernel(math.sqrt(E), V, tile_l, E, L_pad, train, dropout_p)

    out = pl.pallas_call(
        kernel,
        out_shape=jax.ShapeDtypeStruct((B, L_pad, E), out_dtype),
        # Sequence axis outer ("parallel" -> v7x megacore sharding), batch inner so the pe block
        # index is constant across consecutive steps and its re-DMA is elided.
        grid=(n_blocks, B),
        in_specs=[
            pl.BlockSpec((None, tile_l, 1), lambda i, b: (b, i, 0)),     # token ids (tiny block)
            pl.BlockSpec((V, E), lambda i, b: (0, 0)),                   # full-resident emb table
            pl.BlockSpec((tile_l, E), lambda i, b: (i, 0)),              # pe rows, reused over b
            pl.BlockSpec(memory_space=pltpu.MemorySpace.SMEM),           # scalar PRNG seed
        ],
        out_specs=pl.BlockSpec((None, tile_l, E), lambda i, b: (b, i, 0)),
        compiler_params=pltpu.CompilerParams(
            dimension_semantics=("parallel", "arbitrary"),
            vmem_limit_bytes=vmem_limit_bytes,
        ),
    )(tgt, emb_table, pe, seed)

    if L_pad != L:
        out = out[:, :L, :]
    return out


# ----------------------------------------------------------------------------------------------
# Demo / correctness check
# ----------------------------------------------------------------------------------------------
if __name__ == "__main__":
    ACTION_SIZE = 50     # vocab size (action_size)
    EMBED_DIM = 256      # module default embedding_dim=256 -> lane-dense (multiple of 128) stores
    BATCH = 2
    SEQ_LEN = 16
    MAX_LEN = 5000       # PositionalEncodingSin(max_len=5000) in DecoderTransformer
    DROPOUT_P = 0.3      # dp in DecoderTransformer

    key = jax.random.PRNGKey(0)
    k_emb, k_tgt = jax.random.split(key)
    emb_table = jax.random.normal(k_emb, (ACTION_SIZE, EMBED_DIM), dtype=jnp.float32)
    targets = jax.random.randint(k_tgt, (BATCH, SEQ_LEN), 0, ACTION_SIZE, dtype=jnp.int32)
    pe = make_sinusoidal_pe(EMBED_DIM, MAX_LEN)
    seed = jnp.array([1234], dtype=jnp.int32)

    scale = math.sqrt(EMBED_DIM)
    y_ref = emb_table[targets] * scale + pe[:SEQ_LEN][None, :, :]

    # Eval mode (deterministic): dropout is identity.
    fwd_eval = jax.jit(functools.partial(
        decoder_embed_forward, dropout_p=DROPOUT_P, train=False))
    y_eval = jax.block_until_ready(fwd_eval(targets, emb_table, pe, seed))
    assert y_eval.shape == (BATCH, SEQ_LEN, EMBED_DIM)
    assert bool(jnp.allclose(y_eval, y_ref, atol=1e-5, rtol=1e-5)), "eval-mode mismatch vs reference"

    # Training mode: dropout fused in-kernel. Every element must be either dropped (exact 0)
    # or the reference value scaled by 1/(1-p); keep fraction must be near 1-p.
    fwd_train = jax.jit(functools.partial(
        decoder_embed_forward, dropout_p=DROPOUT_P, train=True))
    y_train = jax.block_until_ready(fwd_train(targets, emb_table, pe, seed))

    inv_keep = 1.0 / (1.0 - DROPOUT_P)
    scaled_ref = y_ref * inv_keep
    dropped = (y_train == 0.0)
    kept_ok = jnp.abs(y_train - scaled_ref) <= 1e-4 * (1.0 + jnp.abs(scaled_ref))
    assert bool(jnp.all(dropped | kept_ok)), "training-mode values are not {0, ref/(1-p)}"
    keep_frac = float(1.0 - jnp.mean(dropped.astype(jnp.float32)))
    assert 0.60 < keep_frac < 0.80, f"dropout keep fraction {keep_frac} far from {1 - DROPOUT_P}"

    print("KERNEL_OK")
</pallas_src>

<mosaic_0001>
module attributes {stable_mosaic.version = 11 : i64} {
  func.func @kernel(%arg0: i32, %arg1: i32, %arg2: memref<1x16x1xi32, #tpu.memory_space<vmem>>, %arg3: memref<50x256xf32, #tpu.memory_space<vmem>>, %arg4: memref<16x256xf32, #tpu.memory_space<vmem>>, %arg5: memref<1xi32, #tpu.memory_space<smem>>, %arg6: memref<1x16x256xf32, #tpu.memory_space<vmem>>) attributes {dimension_semantics = [#tpu.dimension_semantics<parallel>, #tpu.dimension_semantics<arbitrary>], iteration_bounds = array<i64: 1, 2>, scalar_prefetch = 0 : i64, scratch_operands = 0 : i64, tpu.core_type = #tpu.core_type<tc>, window_params = [{transform_indices = @transform_0, window_bounds = array<i64: 1, 16, 1>}, {pipeline_mode = #tpu.pipeline_mode<synchronous>, transform_indices = @transform_1, window_bounds = array<i64: 50, 256>}, {transform_indices = @transform_2, window_bounds = array<i64: 16, 256>}, {transform_indices = @transform_3, window_bounds = array<i64: 1>}, {transform_indices = @transform_4, window_bounds = array<i64: 1, 16, 256>}]} {
    %c0 = arith.constant 0 : index
    %c0_0 = arith.constant 0 : index
    %c0_1 = arith.constant 0 : index
    %0 = vector.load %arg2[%c0, %c0_0, %c0_1] : memref<1x16x1xi32, #tpu.memory_space<vmem>>, vector<1x16x1xi32>
    %1 = vector.shape_cast %0 : vector<1x16x1xi32> to vector<16x1xi32>
    %2 = tpu.iota {dimensions = array<i32: 1>} : vector<16x50xi32>
    %3 = vector.broadcast %1 : vector<16x1xi32> to vector<16x50xi32>
    %4 = arith.cmpi eq, %3, %2 : vector<16x50xi32>
    %5 = arith.extui %4 : vector<16x50xi1> to vector<16x50xi32>
    %6 = arith.sitofp %5 : vector<16x50xi32> to vector<16x50xf32>
    %c0_2 = arith.constant 0 : index
    %c0_3 = arith.constant 0 : index
    %7 = vector.load %arg3[%c0_2, %c0_3] : memref<50x256xf32, #tpu.memory_space<vmem>>, vector<50x256xf32>
    %cst = arith.constant dense<0.000000e+00> : vector<16x256xf32>
    %8 = tpu.matmul %6, %7, %cst {dimension_numbers = #tpu.dot_dimension_numbers<[1], [0], [0], [1], [0, 0, 1, 1], [], []>} : vector<16x50xf32>, vector<50x256xf32>, vector<16x256xf32> -> vector<16x256xf32>
    %cst_4 = arith.constant 1.600000e+01 : f32
    %9 = vector.broadcast %cst_4 : f32 to vector<16x256xf32>
    %10 = arith.mulf %8, %9 : vector<16x256xf32>
    %c0_5 = arith.constant 0 : index
    %c0_6 = arith.constant 0 : index
    %11 = vector.load %arg4[%c0_5, %c0_6] : memref<16x256xf32, #tpu.memory_space<vmem>>, vector<16x256xf32>
    %12 = arith.addf %10, %11 : vector<16x256xf32>
    %c0_7 = arith.constant 0 : index
    %c0_8 = arith.constant 0 : index
    %c0_9 = arith.constant 0 : index
    %13 = vector.load %arg6[%c0_7, %c0_8, %c0_9] : memref<1x16x256xf32, #tpu.memory_space<vmem>>, vector<1x16x256xf32>
    %14 = vector.shape_cast %13 : vector<1x16x256xf32> to vector<16x256xf32>
    %15 = vector.shape_cast %12 : vector<16x256xf32> to vector<1x16x256xf32>
    tpu.vector_store %arg6[%c0_7, %c0_8, %c0_9], %15 {strides = array<i32>} : memref<1x16x256xf32, #tpu.memory_space<vmem>>, vector<1x16x256xf32>,
    return
  }
  func.func @transform_0(%arg0: i32, %arg1: i32) -> (i32, i32, i32) {
    %c0_i32 = arith.constant 0 : i32
    %c0_i32_0 = arith.constant 0 : i32
    return %arg1, %arg0, %c0_i32 : i32, i32, i32
  }
  func.func @transform_1(%arg0: i32, %arg1: i32) -> (i32, i32) {
    %c0_i32 = arith.constant 0 : i32
    %c0_i32_0 = arith.constant 0 : i32
    %c0_i32_1 = arith.constant 0 : i32
    return %c0_i32, %c0_i32_0 : i32, i32
  }
  func.func @transform_2(%arg0: i32, %arg1: i32) -> (i32, i32) {
    %c0_i32 = arith.constant 0 : i32
    %c0_i32_0 = arith.constant 0 : i32
    return %arg0, %c0_i32 : i32, i32
  }
  func.func @transform_3(%arg0: i32, %arg1: i32) -> i32 {
    %c0_i32 = arith.constant 0 : i32
    %c0_i32_0 = arith.constant 0 : i32
    return %c0_i32 : i32
  }
  func.func @transform_4(%arg0: i32, %arg1: i32) -> (i32, i32, i32) {
    %c0_i32 = arith.constant 0 : i32
    %c0_i32_0 = arith.constant 0 : i32
    return %arg1, %arg0, %c0_i32 : i32, i32, i32
  }
}

</mosaic_0001>

<llo_original>
// kernel: decoder_embed_forward.1
$region0: #{decoder_embed_forward.1}
  #allocation0 [shape = 'u32[]', space=smem, size = 0x4, offset = 0x4, fixed_abs, tag = 'smem constant byte address 0x4 - core index']
  #allocation1 [shape = 'u32[72,128]{1,0:T(1,128)}', space=vmem, size = 0x9000, scoped, tag = 'internal scratch']
  #allocation2 [shape = 's32[1]{0:T(128)S(6)}', space=smem, size = 0x200, scoped, tag = 'scoped memory for decoder_embed_forward.1']
  %s0 = inlined_call_operand.vmem [shape: s32[2,16,1], index: 0, kind: input, shape index: {}]
  %s1 = inlined_call_operand.hbm [shape: f32[50,256], index: 1, kind: input, shape index: {}]
  %s2 = inlined_call_operand.hbm [shape: f32[5000,256], index: 2, kind: input, shape index: {}]
  %s3 = inlined_call_operand.<no memory space> [shape: s32[1], index: 3, kind: input, shape index: {}]
  %s4 = inlined_call_operand.hbm [shape: f32[2,16,256], index: 4, kind: output, shape index: {}]
  %s5 = sld [smem:[#allocation0]]
  $region57: #{decoder_embed_forward.1} parent=0
    _
  %s7 = ssub.s32 1, %s5
  %s8 = scalar_select 0, %s7, %s5
  %9 = sst [smem:[#allocation2]] %s3
  $region1: #{decoder_embed_forward.1} parent=0
    #allocation3 [shape = 'u8[57344]{0}', space=vmem, size = 0xe000, scoped, tag = 'input window, operand 1, single buffered']
    #allocation4 [shape = 's32[2]{0}', space=sflag, size = 0x8, scoped, tag = 'scoped memory for decoder_embed_forward.1']
    #allocation5 [shape = 's32[2]{0}', space=sflag, size = 0x8, scoped, tag = 'scoped memory for decoder_embed_forward.1']
    #allocation6 [shape = 'u8[16384]{0}', space=vmem, size = 0x4000, scoped, tag = 'input window, operand 2, single buffered']
    #allocation7 [shape = 's32[1]{0}', space=sflag, size = 0x4, scoped, tag = 'scoped memory for decoder_embed_forward.1']
    #allocation8 [shape = 'u8[32768]{0}', space=vmem, size = 0x8000, scoped, tag = 'output window, operand 0']
    %10 = vsyncpa [#allocation4], 0
    %11 = vsyncpa [#allocation7], 0
    %12 = vsyncpa [#allocation5], 0
    %s13 = scalar_lea.sflag [#allocation5], 1
    %14 = vsyncpa %s13, 0
    loop: start=0, step=1, limit=4
    $region2: #{decoder_embed_forward.1} parent=1 // loop_pre_header
      _
    $region3: #{decoder_embed_forward.1} parent=1 // loop_header
      %s16 = sphi 0, %s20
      %p17 = scmp.ge.s32.totalorder %s16, 4
      %s23 = sphi 0, %s35
      %s24 = sphi 0, %s31
      %s25 = sphi 0, %s23
      %s26 = sphi 0, %s24
      %s27 = sphi 0, %s25
      %s28 = sphi 0, %s26
      %s40 = sphi 0, %s42
      %s43 = sphi 0, %s40
      %s44 = sphi 0, %s43
      %s60 = sphi 0, %s44
      %s64 = sphi 0, %s64
      %s66 = sphi 0, %s64
      %s67 = sphi 0, %s66
      %s81 = sphi 0, %s67
      %s87 = sphi 0, %s89
      %s90 = sphi 0, %s87
      %s91 = sphi 0, %s90
      %s107 = sphi 0, %s91
      %s111 = sphi 0, %s111
      %s113 = sphi 0, %s111
      %s114 = sphi 0, %s113
      %s128 = sphi 0, %s114
      %s136 = sphi 0, %s138
      %s139 = sphi 0, %s136
      %s140 = sphi 0, %s139
      %s156 = sphi 0, %s140
    $region4: #{decoder_embed_forward.1} parent=1 // loop_header_branch
      %19 = sbr.rel (%p17) target = $region8
    $region5: #{decoder_embed_forward.1} parent=1 // loop_body
      %s21 = ssub.s32 %s16, 1
      %s22 = ssub.s32 %s16, 2
      %s29 = sadd.s32 1, %s24
      %p30 = scmp.ge.s32.totalorder %s29, 2
      %s31 = scalar_select %p30, 0, %s29
      %s32 = sadd.s32 1, %s23
      %s33 = scalar_select %p30, %s32, %s23
      %p34 = scmp.ge.s32.totalorder %s33, 1
      %s35 = scalar_select %p34, 0, %s33
      %s36 = ssub.s32 %s24, %s31
      %s37 = ssub.s32 %s23, %s35
      %s38 = sor.u32 %s36, %s37
      %p39 = scmp.eq.s32.totalorder %s38, 0
      %s41 = sadd.s32 %s40, 1
      %s42 = scalar_select %p39, %s40, %s41
      %p45 = pneg %p39
      %p46 = scmp.eq.s32.totalorder %s16, 1
      %p47 = por %p45, %p46
      %p48 = scmp.ne.s32.totalorder %s40, %s43
      %p49 = scmp.eq.s32.totalorder %s16, 0
      %p50 = por %p48, %p49
      %p51 = scmp.ne.s32.totalorder %s40, %s43
      %p52 = scmp.eq.s32.totalorder %s21, 1
      %p53 = por %p51, %p52
      %p54 = scmp.ne.s32.totalorder %s43, %s44
      %p55 = scmp.eq.s32.totalorder %s21, 0
      %p56 = por %p54, %p55
      %p57 = scmp.ne.s32.totalorder %s43, %s44
      %p58 = scmp.eq.s32.totalorder %s22, 1
      %p59 = por %p57, %p58
      %p61 = scmp.ne.s32.totalorder %s44, %s60
      %p62 = scmp.eq.s32.totalorder %s22, 0
      %p63 = por %p61, %p62
      %s65 = sadd.s32 %s64, 1
      %p68 = scmp.eq.s32.totalorder %s16, 1
      %p69 = scmp.ne.s32.totalorder %s64, %s66
      %p70 = scmp.eq.s32.totalorder %s16, 0
      %p71 = por %p69, %p70
      %p72 = scmp.ne.s32.totalorder %s64, %s66
      %p73 = scmp.eq.s32.totalorder %s21, 1
      %p74 = por %p72, %p73
      %p75 = scmp.ne.s32.totalorder %s66, %s67
      %p76 = scmp.eq.s32.totalorder %s21, 0
      %p77 = por %p75, %p76
      %p78 = scmp.ne.s32.totalorder %s66, %s67
      %p79 = scmp.eq.s32.totalorder %s22, 1
      %p80 = por %p78, %p79
      %p82 = scmp.ne.s32.totalorder %s67, %s81
      %p83 = scmp.eq.s32.totalorder %s22, 0
      %p84 = por %p82, %p83
      %s85 = ssub.s32 %s23, %s35
      %p86 = scmp.eq.s32.totalorder %s85, 0
      %s88 = sadd.s32 %s87, 1
      %s89 = scalar_select %p86, %s87, %s88
      %p92 = pneg %p86
      %p93 = scmp.eq.s32.totalorder %s16, 1
      %p94 = por %p92, %p93
      %p95 = scmp.ne.s32.totalorder %s87, %s90
      %p96 = scmp.eq.s32.totalorder %s16, 0
      %p97 = por %p95, %p96
      %p98 = scmp.ne.s32.totalorder %s87, %s90
      %p99 = scmp.eq.s32.totalorder %s21, 1
      %p100 = por %p98, %p99
      %p101 = scmp.ne.s32.totalorder %s90, %s91
      %p102 = scmp.eq.s32.totalorder %s21, 0
      %p103 = por %p101, %p102
      %p104 = scmp.ne.s32.totalorder %s90, %s91
      %p105 = scmp.eq.s32.totalorder %s22, 1
      %p106 = por %p104, %p105
      %p108 = scmp.ne.s32.totalorder %s91, %s107
      %p109 = scmp.eq.s32.totalorder %s22, 0
      %p110 = por %p108, %p109
      %s112 = sadd.s32 %s111, 1
      %p115 = scmp.eq.s32.totalorder %s16, 1
      %p116 = scmp.ne.s32.totalorder %s111, %s113
      %p117 = scmp.eq.s32.totalorder %s16, 0
      %p118 = por %p116, %p117
      %p119 = scmp.ne.s32.totalorder %s111, %s113
      %p120 = scmp.eq.s32.totalorder %s21, 1
      %p121 = por %p119, %p120
      %p122 = scmp.ne.s32.totalorder %s113, %s114
      %p123 = scmp.eq.s32.totalorder %s21, 0
      %p124 = por %p122, %p123
      %p125 = scmp.ne.s32.totalorder %s113, %s114
      %p126 = scmp.eq.s32.totalorder %s22, 1
      %p127 = por %p125, %p126
      %p129 = scmp.ne.s32.totalorder %s114, %s128
      %p130 = scmp.eq.s32.totalorder %s22, 0
      %p131 = por %p129, %p130
      %s132 = ssub.s32 %s24, %s31
      %s133 = ssub.s32 %s23, %s35
      %s134 = sor.u32 %s132, %s133
      %p135 = scmp.eq.s32.totalorder %s134, 0
      %s137 = sadd.s32 %s136, 1
      %s138 = scalar_select %p135, %s136, %s137
      %p141 = pneg %p135
      %p142 = scmp.eq.s32.totalorder %s16, 1
      %p143 = por %p141, %p142
      %p144 = scmp.ne.s32.totalorder %s136, %s139
      %p145 = scmp.eq.s32.totalorder %s16, 0
      %p146 = por %p144, %p145
      %p147 = scmp.ne.s32.totalorder %s136, %s139
      %p148 = scmp.eq.s32.totalorder %s21, 1
      %p149 = por %p147, %p148
      %p150 = scmp.ne.s32.totalorder %s139, %s140
      %p151 = scmp.eq.s32.totalorder %s21, 0
      %p152 = por %p150, %p151
      %p153 = scmp.ne.s32.totalorder %s139, %s140
      %p154 = scmp.eq.s32.totalorder %s22, 1
      %p155 = por %p153, %p154
      %p157 = scmp.ne.s32.totalorder %s140, %s156
      %p158 = scmp.eq.s32.totalorder %s22, 0
      %p159 = por %p157, %p158
      %p160 = scmp.le.s32.totalorder 1, %s16
      %p161 = scmp.lt.s32.totalorder %s16, 3
      %p162 = pnand %p160, %p161
      %p163 = pneg %p162
      // Predicated region
      $region9: #{decoder_embed_forward.1} parent=5 // pred_check
        _
      $region10: #{decoder_embed_forward.1} parent=5 // pred_check_branch
        %165 = sbr.rel (%p162) target = $region12
      $region11: #{decoder_embed_forward.1} parent=5 // pred_region
        %s166 = ssub.s32 %s16, 1
        // Predicated region
        $region13: #{decoder_embed_forward.1} parent=11 // pred_check
          %p167 = pneg %p77
        $region14: #{decoder_embed_forward.1} parent=11 // pred_check_branch
          %169 = sbr.rel (%p167) target = $region16
        $region15: #{decoder_embed_forward.1} parent=11 // pred_region
          %171 = vsyncadd [#allocation4], 0
          %s172 = sshll.u32 %s1, 4
          %s173 = int_to_ptr.hbm [resolvable:$true] %s172
          %s174 = sshll.u32 [#allocation3], 4
          %s175 = int_to_ptr.vmem [resolvable:$true] %s174
          %180 = dma.hbm_to_vmem [thread:$0]  %s173, 1792, %s175, [#allocation4], 256, 256, 16
        $region16: #{decoder_embed_forward.1} parent=11 // pred_fallthru
          _
        // Predicated region
        $region17: #{decoder_embed_forward.1} parent=11 // pred_check
          %p181 = pneg %p103
        $region18: #{decoder_embed_forward.1} parent=11 // pred_check_branch
          %183 = sbr.rel (%p181) target = $region20
        $region19: #{decoder_embed_forward.1} parent=11 // pred_region
          %s184 = smul.u32 2, %s25
          %s185 = ssub.s32 625, %s184
          %p186 = scmp.lt.s32.totalorder %s185, 2
          %s187 = scalar_select %p186, %s185, 2
          %s188 = smul.u32 8, %s187
          %s189 = smul.u32 %s188, 2
          %s190 = ssub.s32 32, %s189
          %s191 = sshll.u32 %s190, 4
          %192 = vsyncadd [#allocation7], %s191
          %p193 = scmp.ne.s32.totalorder 0, %s189
          %s194 = smul.addr %s184, 2
          %s195 = smul.addr %s194, 8
          %s196 = scalar_lea.hbm %s2, %s195
          %s197 = smul.u32 16, %s187
          %s198 = sshll.u32 %s196, 4
          %s199 = int_to_ptr.hbm [resolvable:$true] %s198
          %s200 = sshll.u32 [#allocation6], 4
          %s201 = int_to_ptr.vmem [resolvable:$true] %s200
          %s202 = sshll.u32 %s197, 4
          %206 = dma.hbm_to_vmem [thread:$0]  (%p193), %s199, %s202, %s201, [#allocation7], 256, 256, 16
        $region20: #{decoder_embed_forward.1} parent=11 // pred_fallthru
          _
        // Predicated region
        $region21: #{decoder_embed_forward.1} parent=11 // pred_check
          %p207 = pneg %p124
        $region22: #{decoder_embed_forward.1} parent=11 // pred_check_branch
          %209 = sbr.rel (%p207) target = $region24
        $region23: #{decoder_embed_forward.1} parent=11 // pred_region
          _
        $region24: #{decoder_embed_forward.1} parent=11 // pred_fallthru
          _
      $region12: #{decoder_embed_forward.1} parent=5 // pred_fallthru
        _
      %p210 = scmp.lt.s32.totalorder %s16, 2
      // Predicated region
      $region25: #{decoder_embed_forward.1} parent=5 // pred_check
        %p211 = pneg %p210
      $region26: #{decoder_embed_forward.1} parent=5 // pred_check_branch
        %213 = sbr.rel (%p211) target = $region28
      $region27: #{decoder_embed_forward.1} parent=5 // pred_region
        // Predicated region
        $region29: #{decoder_embed_forward.1} parent=27 // pred_check
          %p214 = pneg %p50
        $region30: #{decoder_embed_forward.1} parent=27 // pred_check_branch
          %216 = sbr.rel (%p214) target = $region32
        $region31: #{decoder_embed_forward.1} parent=27 // pred_region
          %s217 = smul.u32 2, %s23
          %p218 = scmp.lt.s32.totalorder %s24, 1
          %s219 = scalar_select %p218, %s24, 1
          %p220 = scmp.lt.s32.totalorder %s217, 1
          %s221 = scalar_select %p220, %s217, 1
          %s222 = smul.addr %s219, 2
          %s223 = sadd.s32 %s221, %s222
          %s224 = smul.addr %s223, 8
          %s225 = scalar_lea.vmem %s0, %s224
          %s226 = smul.u32 2, %s23
        $region32: #{decoder_embed_forward.1} parent=27 // pred_fallthru
          _
      $region28: #{decoder_embed_forward.1} parent=5 // pred_fallthru
        _
      %p227 = scmp.le.s32.totalorder 1, %s16
      %p228 = scmp.lt.s32.totalorder %s16, 3
      %p229 = pnand %p227, %p228
      %p230 = pneg %p229
      // Predicated region
      $region33: #{decoder_embed_forward.1} parent=5 // pred_check
        _
      $region34: #{decoder_embed_forward.1} parent=5 // pred_check_branch
        %232 = sbr.rel (%p229) target = $region36
      $region35: #{decoder_embed_forward.1} parent=5 // pred_region
        %s233 = ssub.s32 %s16, 1
        // Predicated region
        $region37: #{decoder_embed_forward.1} parent=35 // pred_check
          %p234 = pneg %p77
        $region38: #{decoder_embed_forward.1} parent=35 // pred_check_branch
          %236 = sbr.rel (%p234) target = $region40
        $region39: #{decoder_embed_forward.1} parent=35 // pred_region
          %238 = dma.done [#allocation4], 1792
        $region40: #{decoder_embed_forward.1} parent=35 // pred_fallthru
          _
        // Predicated region
        $region41: #{decoder_embed_forward.1} parent=35 // pred_check
          %p239 = pneg %p103
        $region42: #{decoder_embed_forward.1} parent=35 // pred_check_branch
          %241 = sbr.rel (%p239) target = $region44
        $region43: #{decoder_embed_forward.1} parent=35 // pred_region
          %243 = dma.done [#allocation7], 512
        $region44: #{decoder_embed_forward.1} parent=35 // pred_fallthru
          _
        %s244 = smul.u32 2, %s25
        %p245 = scmp.lt.s32.totalorder %s26, 1
        %s246 = scalar_select %p245, %s26, 1
        %p247 = scmp.lt.s32.totalorder %s244, 1
        %s248 = scalar_select %p247, %s244, 1
        %s249 = smul.addr %s246, 2
        %s250 = sadd.s32 %s248, %s249
        %s251 = smul.addr %s250, 8
        %s252 = scalar_lea.vmem %s0, %s251
        %p253 = pneg %p56
        %p254 = pneg %p53
        %p255 = pneg %p77
        %p256 = pneg %p74
        %p257 = pneg %p103
        %p258 = pneg %p100
        %p259 = pneg %p124
        %p260 = pneg %p121
        %p261 = pneg %p152
        %p262 = pneg %p149
        %s263 = sand.u32 %s139, 1
        %s264 = scalar_lea.sflag [#allocation5], %s263
        %s265 = sand.u32 %s139, 1
        %s266 = smul.addr %s265, 32
        %s267 = scalar_lea.vmem [#allocation8], %s266
        %s268 = smul.u32 2, %s25
        %p269 = scmp.lt.s32.totalorder %s26, 1
        %s270 = scalar_select %p269, %s26, 1
        %p271 = scmp.lt.s32.totalorder %s268, 1
        %s272 = scalar_select %p271, %s268, 1
        %s273 = smul.addr %s270, 2
        %s274 = sadd.s32 %s272, %s273
        %s275 = smul.addr %s274, 8
        %s276 = scalar_lea.vmem %s0, %s275
        %s277 = smul.u32 2, %s25
        %s278 = smul.u32 2, %s25
        %s279 = ssub.s32 625, %s278
        %p280 = scmp.lt.s32.totalorder %s279, 2
        %s281 = scalar_select %p280, %s279, 2
        %s282 = smul.u32 8, %s281
        %s283 = smul.u32 %s282, 2
        %s284 = smul.u32 2, %s25
        %v285 = vld [vmem:[%s276] sm:$0xff]
        %v286 = vld [vmem:[%s276 + $0x8] sm:$0xff]
        %v287 = vlaneseq
        %v288 = vand.u32 %v287, 127
        %289 = vset.pattern.permute.xlu0 0
        %290 = vperm.xlu0 %289, %v285
        %v291 = vpop.permute.xlu0 %290
        %292 = vset.pattern.permute.xlu0 0
        %293 = vperm.xlu0 %292, %v286
        %v294 = vpop.permute.xlu0 %293
        %vm295 = vcmp.eq.s32.totalorder %v291, %v288
        %vm296 = vcmp.eq.s32.totalorder %v294, %v288
        %v297 = vsel %vm295, 1, 0
        %v298 = vsel %vm296, 1, 0
        %v299 = vcvt.s32.f32 %v297
        %v300 = vcvt.s32.f32 %v298
        %v301 = vld [vmem:[#allocation3] sm:$0xff]
        %v302 = vld [vmem:[#allocation3 + $0x8] sm:$0xff]
        %v303 = vld [vmem:[#allocation3 + $0x10] sm:$0xff]
        %v304 = vld [vmem:[#allocation3 + $0x18] sm:$0xff]
        %v305 = vld [vmem:[#allocation3 + $0x20] sm:$0xff]
        %v306 = vld [vmem:[#allocation3 + $0x28] sm:$0xff]
        %v307 = vld [vmem:[#allocation3 + $0x30] sm:$0xff]
        %v308 = vld [vmem:[#allocation3 + $0x38] sm:$0xff]
        %v309 = vld [vmem:[#allocation3 + $0x40] sm:$0xff]
        %v310 = vld [vmem:[#allocation3 + $0x48] sm:$0xff]
        %v311 = vld [vmem:[#allocation3 + $0x50] sm:$0xff]
        %v312 = vld [vmem:[#allocation3 + $0x58] sm:$0xff]
        %v313 = vld [vmem:[#allocation3 + $0x60] sm:$0x3]
        %v314 = vld [vmem:[#allocation3 + $0x68] sm:$0x3]
        %vm315 = vcmask 408576
        %v317 = vsel %vm315, %v299, 0
        %v320 = vsel %vm315, %v300, 0
        %vm322 = vcmask 1041408
        %v324 = vsel %vm322, %v313, 0
        %v327 = vsel %vm322, %v314, 0
        %329 = vmatpush.msra.mxu0 0.0
        %330 = vmatpush.msra.mxu0 0.0
        %331 = vmatpush.msra.mxu0 0.0
        %332 = vmatpush.msra.mxu0 0.0
        %333 = vmatpush.msra.mxu0 0.0
        %334 = vmatpush.msra.mxu0 0.0
        %335 = vmatpush.msra.mxu0 0.0
        %336 = vmatpush.msra.mxu0 0.0
        %337 = vmatpush.msra.mxu0 0.0
        %338 = vmatpush.msra.mxu0 %v324
        %339 = vmatpush.msra.mxu0 %v311
        %340 = vmatpush.msra.mxu0 %v309
        %341 = vmatpush.msra.mxu0 %v307
        %342 = vmatpush.msra.mxu0 %v305
        %343 = vmatpush.msra.mxu0 %v303
        %344 = vmatpush.msra.mxu0 %v301
        %345 = vmatmul.f32.gmra.mxu0 %v317
        %v346 = vpop.f32.mrf.mxu0
        %v347 = vadd.f32 0.0, %v346
        %348 = vmatmul.f32.gmra.mxu0 %v320
        %v349 = vpop.f32.mrf.mxu0
        %v350 = vadd.f32 0.0, %v349
        %351 = vdwg.mxu0
        %352 = vmatpush.msra.mxu0 0.0
        %353 = vmatpush.msra.mxu0 0.0
        %354 = vmatpush.msra.mxu0 0.0
        %355 = vmatpush.msra.mxu0 0.0
        %356 = vmatpush.msra.mxu0 0.0
        %357 = vmatpush.msra.mxu0 0.0
        %358 = vmatpush.msra.mxu0 0.0
        %359 = vmatpush.msra.mxu0 0.0
        %360 = vmatpush.msra.mxu0 0.0
        %361 = vmatpush.msra.mxu0 %v327
        %362 = vmatpush.msra.mxu0 %v312
        %363 = vmatpush.msra.mxu0 %v310
        %364 = vmatpush.msra.mxu0 %v308
        %365 = vmatpush.msra.mxu0 %v306
        %366 = vmatpush.msra.mxu0 %v304
        %367 = vmatpush.msra.mxu0 %v302
        %368 = vmatmul.f32.gmra.mxu0 %v317
        %v369 = vpop.f32.mrf.mxu0
        %v370 = vadd.f32 0.0, %v369
        %371 = vmatmul.f32.gmra.mxu0 %v320
        %v372 = vpop.f32.mrf.mxu0
        %v373 = vadd.f32 0.0, %v372
        %374 = vdwg.mxu0
        %v375 = vmul.f32 %v347, 16.0
        %v376 = vmul.f32 %v370, 16.0
        %v377 = vmul.f32 %v350, 16.0
        %v378 = vmul.f32 %v373, 16.0
        %v379 = vld [vmem:[#allocation6] sm:$0xff]
        %v380 = vld [vmem:[#allocation6 + $0x8] sm:$0xff]
        %v381 = vld [vmem:[#allocation6 + $0x10] sm:$0xff]
        %v382 = vld [vmem:[#allocation6 + $0x18] sm:$0xff]
        %v383 = vadd.f32 %v375, %v379
        %v384 = vadd.f32 %v376, %v380
        %v385 = vadd.f32 %v377, %v381
        %v386 = vadd.f32 %v378, %v382
        %387 = vst [vmem:[%s267] sm:$0xff] %v383
        %388 = vst [vmem:[%s267 + $0x8] sm:$0xff] %v384
        %389 = vst [vmem:[%s267 + $0x10] sm:$0xff] %v385
        %390 = vst [vmem:[%s267 + $0x18] sm:$0xff] %v386
        %s391 = sand.u32 %s139, 1
        %s392 = scalar_lea.sflag [#allocation5], %s391
        %s393 = sand.u32 %s139, 1
        %s394 = smul.addr %s393, 32
        %s395 = scalar_lea.vmem [#allocation8], %s394
        // Predicated region
        $region45: #{decoder_embed_forward.1} parent=35 // pred_check
          %p396 = pneg %p149
        $region46: #{decoder_embed_forward.1} parent=35 // pred_check_branch
          %398 = sbr.rel (%p396) target = $region48
        $region47: #{decoder_embed_forward.1} parent=35 // pred_region
          %s399 = smul.u32 2, %s25
          %401 = vsyncadd %s392, 0
          %s402 = smul.addr %s399, 2
          %s403 = smul.addr %s26, 4
          %s404 = sadd.s32 %s402, %s403
          %s405 = smul.addr %s404, 8
          %s406 = scalar_lea.hbm %s4, %s405
          %s407 = sshll.u32 %s395, 4
          %s408 = int_to_ptr.vmem [resolvable:$true] %s407
          %s409 = sshll.u32 %s406, 4
          %s410 = int_to_ptr.hbm [resolvable:$true] %s409
          %415 = dma.vmem_to_hbm [thread:$0]  %s408, 512, %s410, %s392, 256, 256, 16
        $region48: #{decoder_embed_forward.1} parent=35 // pred_fallthru
          _
      $region36: #{decoder_embed_forward.1} parent=5 // pred_fallthru
        _
      %p416 = scmp.le.s32.totalorder 2, %s16
      // Predicated region
      $region49: #{decoder_embed_forward.1} parent=5 // pred_check
        %p417 = pneg %p416
      $region50: #{decoder_embed_forward.1} parent=5 // pred_check_branch
        %419 = sbr.rel (%p417) target = $region52
      $region51: #{decoder_embed_forward.1} parent=5 // pred_region
        %s420 = ssub.s32 %s16, 2
        // Predicated region
        $region53: #{decoder_embed_forward.1} parent=51 // pred_check
          %p421 = pneg %p155
        $region54: #{decoder_embed_forward.1} parent=51 // pred_check_branch
          %423 = sbr.rel (%p421) target = $region56
        $region55: #{decoder_embed_forward.1} parent=51 // pred_region
          %s424 = sand.u32 %s140, 1
          %s425 = scalar_lea.sflag [#allocation5], %s424
          %s426 = sand.u32 %s140, 1
          %s427 = smul.addr %s426, 32
          %s428 = scalar_lea.vmem [#allocation8], %s427
          %430 = dma.done %s425, 512
        $region56: #{decoder_embed_forward.1} parent=51 // pred_fallthru
          _
      $region52: #{decoder_embed_forward.1} parent=5 // pred_fallthru
        _
    $region6: #{decoder_embed_forward.1} parent=1 // loop_footer
      %s20 = sadd.s32 1, %s16
    $region7: #{decoder_embed_forward.1} parent=1 // loop_footer_branch
      %15 = sbr.rel target = $region3
    $region8: #{decoder_embed_forward.1} parent=1 // loop_exit
      _
    %431 = vsyncpa [#allocation4], 1
    %s432 = scalar_lea.sflag [#allocation4], 1
    %433 = vsyncpa %s432, 1
    %434 = vsyncpa [#allocation7], 1
    %435 = vsyncpa [#allocation5], 1
    %s436 = scalar_lea.sflag [#allocation5], 1
    %437 = vsyncpa %s436, 1

</llo_original>
